<compile_context>
chip_gen: v7x
topology: tpu7x:2x2x1
jax: 0.10.0
libtpu: 0.0.40
codegen_flags: <defaults>
</compile_context>

<pallas_src>
import numpy as np
import jax
import jax.numpy as jnp
from jax import lax
from jax.experimental import pallas as pl
from jax.experimental.pallas import tpu as pltpu

# ---- module hyper-parameters (YOLOv1Loss.__init__ defaults) -----------------
S, B, C = 7, 2, 20
IGNORE_THRESH = 0.5
LAMBDA_COORD, LAMBDA_OBJ, LAMBDA_NOOBJ, LAMBDA_CLASS = 5.0, 1.0, 0.5, 1.0
N_CH = 5 * B + C            # 30 prediction channels (box | conf | class logits)
TGT_CH = 16                 # packed target channels (see builder below)


def _round_up(x, m):
    return (x + m - 1) // m * m


# -----------------------------------------------------------------------------
# Pallas kernel (channel-major): sigmoid + masked MSE + softmax CE, all lambdas
# pre-folded into the target-slab weights; one fused reduction per tile.
# -----------------------------------------------------------------------------
def _yolo_loss_kernel(pred_ref, tgt_ref, loss_ref, acc_ref):
    i = pl.program_id(1)

    @pl.when(i == 0)
    def _():
        acc_ref[0] = 0.0

    tgt = tgt_ref[...]                                        # (16, T)

    # one contiguous sigmoid over box + confidence channels (single EUP stream)
    sig = jax.nn.sigmoid(pred_ref[0:10, :])                   # (10, T)

    # confidence term: weights already hold lambda_obj / lambda_noobj
    conf_loss = (sig[8:10, :] - tgt[0:2, :]) ** 2 * tgt[2:4, :]        # (2, T)

    # box term: channels [x0,y0,w0,h0,x1,y1,w1,h1]; wh channels take sqrt
    # (target wh pre-sqrt'ed in the builder; box weights hold lambda_coord)
    box_pred = sig[0:8, :]                                    # (8, T)
    ch8 = lax.broadcasted_iota(jnp.int32, box_pred.shape, 0)
    is_wh = (ch8 % 4) >= 2
    bp = jnp.where(is_wh, jnp.sqrt(box_pred), box_pred)
    sq = (bp - tgt[4:12, :]) ** 2                             # (8, T)
    box_loss = sq[0:4, :] * tgt[12:13, :] + sq[4:8, :] * tgt[13:14, :]  # (4, T)

    # class term: softmax cross-entropy along the class (sublane) axis;
    # class weight already holds lambda_class (and zeros for unmasked cells)
    logits = pred_ref[10:30, :]                               # (20, T)
    cls_idx = tgt[14:15, :].astype(jnp.int32)                 # (1, T)
    cls_w = tgt[15:16, :]                                     # (1, T)
    row_max = jnp.max(logits, axis=0, keepdims=True)          # (1, T)
    lse = jnp.log(jnp.sum(jnp.exp(logits - row_max), axis=0, keepdims=True)) + row_max
    chc = lax.broadcasted_iota(jnp.int32, logits.shape, 0)    # (20, T)
    picked = jnp.sum(jnp.where(chc == cls_idx, logits, 0.0), axis=0, keepdims=True)
    class_loss = (lse - picked) * cls_w                       # (1, T)

    # fused per-cell reduction -> one scalar partial per tile
    per_cell = (jnp.sum(conf_loss, axis=0, keepdims=True)
                + jnp.sum(box_loss, axis=0, keepdims=True)
                + class_loss)                                 # (1, T)
    acc_ref[0] += jnp.sum(per_cell)

    @pl.when(i == pl.num_programs(1) - 1)
    def _():
        # per-core partial broadcast into this core's (1, 8, 128) output block;
        # wrapper reads [:, 0, 0] and sums over cores.
        loss_ref[...] = jnp.zeros(loss_ref.shape, jnp.float32) + acc_ref[0]


# -----------------------------------------------------------------------------
# build_target: vectorized JAX (vmap over images, fori_loop over objects)
# TODO(synk): the per-object dynamic-index scatter has no clean whole-array
#             Pallas form; it runs as fused XLA (scatter/drop) on device, the
#             reductions run in the Pallas kernel above.
# -----------------------------------------------------------------------------
def _bboxes_iou(a, b):
    """IoU of (P,4) vs (M,4) boxes in (cx, cy, w, h) format."""
    tl = jnp.maximum(a[:, None, :2] - a[:, None, 2:] * 0.5,
                     b[None, :, :2] - b[None, :, 2:] * 0.5)
    br = jnp.minimum(a[:, None, :2] + a[:, None, 2:] * 0.5,
                     b[None, :, :2] + b[None, :, 2:] * 0.5)
    area_a = jnp.prod(a[:, 2:], axis=1)
    area_b = jnp.prod(b[:, 2:], axis=1)
    en = jnp.prod((tl < br).astype(a.dtype), axis=2)
    area_i = jnp.prod(br - tl, axis=2) * en
    return area_i / (area_a[:, None] + area_b[None, :] - area_i)


def _build_target_image(out_chw, tgt_img):
    """out_chw: (30, S, S) raw logits (native NCHW slice); tgt_img: (max_objs, 5)
    rows = [cls, cx, cy, w, h] (normalized).  Returns the packed channel-major
    target slab (TGT_CH, S*S) f32 with lambdas folded into the weights:
      ch [0:2)   iou_target (b0, b1)
      ch [2:4)   conf weight = l_obj*[mask==2] + l_noobj*[mask==1]
      ch [4:8)   box target b0 (x, y, sqrt(w), sqrt(h))
      ch [8:12)  box target b1
      ch [12:14) box weight = l_coord * box_mask (b0, b1)
      ch [14]    class index (as f32)
      ch [15]    class weight = l_class * class_mask
    """
    H = W = S
    f32 = jnp.float32
    max_objs = tgt_img.shape[0]

    num_obj = jnp.sum((jnp.sum(tgt_img, axis=1) > 0).astype(jnp.int32))

    # predicted boxes in grid units (needed only for the IoU / ignore mask)
    pb = jax.nn.sigmoid(out_chw[:B * 4].reshape(B, 4, H, W))
    pb = jnp.transpose(pb, (2, 3, 0, 1))                                # (H,W,B,4)
    x_shift = jnp.arange(W, dtype=f32).reshape(1, W, 1)
    y_shift = jnp.arange(H, dtype=f32).reshape(H, 1, 1)
    pred_boxes = jnp.stack(
        [pb[..., 0] + x_shift, pb[..., 1] + y_shift,
         pb[..., 2] * W, pb[..., 3] * H], axis=-1).reshape(H * W * B, 4)

    gt_cls = tgt_img[:, 0]
    gt_boxes = tgt_img[:, 1:] * jnp.array([W, H, W, H], f32)            # (max_objs,4)

    valid = jnp.arange(max_objs, dtype=jnp.int32) < num_obj
    ious = _bboxes_iou(pred_boxes, gt_boxes).reshape(H * W, B, max_objs)
    max_iou = jnp.max(jnp.where(valid[None, None, :], ious, -1.0), axis=-1)  # (HW,B)

    n_pos = jnp.sum((max_iou > IGNORE_THRESH).astype(jnp.int32))
    ignore = (max_iou >= IGNORE_THRESH) & (n_pos > 0)
    iou_mask = jnp.where(ignore, 0.0, 1.0).astype(f32)
    iou_mask = jnp.where(num_obj > 0, iou_mask, jnp.zeros_like(iou_mask))

    iou_target = jnp.zeros((H * W, B), f32)
    box_target = jnp.zeros((H * W, B, 4), f32)
    box_mask = jnp.zeros((H * W, B), f32)
    class_idx = jnp.zeros((H * W,), jnp.int32)
    class_mask = jnp.zeros((H * W,), f32)

    def body(oi, carry):
        iou_t, iou_m, box_t, box_m, cls_i, cls_m = carry
        gt_box = gt_boxes[oi]
        cell_x = jnp.floor(gt_box[0])
        cell_y = jnp.floor(gt_box[1])
        cell = jnp.clip((cell_y * W + cell_x).astype(jnp.int32), 0, H * W - 1)
        amax = jnp.argmax(ious[cell, :, oi]).astype(jnp.int32)
        delta = jnp.stack([gt_box[0] - cell_x, gt_box[1] - cell_y,
                           gt_box[2] / W, gt_box[3] / H])
        # invalid (padded) objects write out of bounds -> dropped
        wcell = jnp.where(oi < num_obj, cell, H * W)
        cls_i = cls_i.at[wcell].set(gt_cls[oi].astype(jnp.int32), mode='drop')
        cls_m = cls_m.at[wcell].set(1.0, mode='drop')
        box_t = box_t.at[wcell, amax].set(delta, mode='drop')
        box_m = box_m.at[wcell, amax].set(1.0, mode='drop')
        iou_t = iou_t.at[wcell, amax].set(max_iou[cell, amax], mode='drop')
        iou_m = iou_m.at[wcell, amax].set(2.0, mode='drop')
        return iou_t, iou_m, box_t, box_m, cls_i, cls_m

    (iou_target, iou_mask, box_target, box_mask, class_idx, class_mask) = lax.fori_loop(
        0, max_objs, body,
        (iou_target, iou_mask, box_target, box_mask, class_idx, class_mask))

    w_conf = (LAMBDA_OBJ * (iou_mask == 2.0).astype(f32)
              + LAMBDA_NOOBJ * (iou_mask == 1.0).astype(f32))
    box_w = LAMBDA_COORD * box_mask
    cls_w = LAMBDA_CLASS * class_mask
    # precompute sqrt of the target wh (pure target data)
    box_target = box_target.at[..., 2:4].set(jnp.sqrt(box_target[..., 2:4]))

    return jnp.concatenate([
        iou_target.T,                      # ch [0:2)
        w_conf.T,                          # ch [2:4)
        box_target[:, 0, :].T,             # ch [4:8)
        box_target[:, 1, :].T,             # ch [8:12)
        box_w.T,                           # ch [12:14)
        class_idx.astype(f32)[None, :],    # ch [14]
        cls_w[None, :],                    # ch [15]
    ], axis=0)                             # (16, S*S)


@jax.jit
def yolov1_loss(outputs, targets):
    """outputs: (N, 5*B+C, S, S) float32 (NCHW); targets: (N, max_objs, 5)."""
    outputs = jnp.asarray(outputs, jnp.float32)
    targets = jnp.asarray(targets, jnp.float32)
    N, n_ch, H, W = outputs.shape
    assert n_ch == N_CH and H == W == S
    m_cells = N * S * S

    # channel-major pred slab straight from NCHW (leading-axes permute only)
    pred_slab = jnp.transpose(outputs, (1, 0, 2, 3)).reshape(N_CH, m_cells)

    # packed channel-major target slab (vectorized builder, leading-axes permute)
    tgt_slab = jnp.transpose(jax.vmap(_build_target_image)(outputs, targets),
                             (1, 0, 2)).reshape(TGT_CH, m_cells)

    # lane-dense tiling over the cell axis; split over 2 cores for large batches
    if m_cells > 1024:
        tile, ncores = 1024, 2
    else:
        tile, ncores = max(128, _round_up(m_cells, 128)), 1
    m_pad = _round_up(m_cells, tile * ncores)
    ntiles = m_pad // (tile * ncores)          # inner ("arbitrary") grid extent
    pad = m_pad - m_cells
    if pad:
        # padded cells have all weights == 0 in the target slab -> no loss leak
        pred_slab = jnp.pad(pred_slab, ((0, 0), (0, pad)))
        tgt_slab = jnp.pad(tgt_slab, ((0, 0), (0, pad)))

    partials = pl.pallas_call(
        _yolo_loss_kernel,
        out_shape=jax.ShapeDtypeStruct((ncores, 8, 128), jnp.float32),
        grid_spec=pltpu.PrefetchScalarGridSpec(
            num_scalar_prefetch=0,
            grid=(ncores, ntiles),
            in_specs=[
                pl.BlockSpec((N_CH, tile), lambda o, i: (0, o * ntiles + i)),
                pl.BlockSpec((TGT_CH, tile), lambda o, i: (0, o * ntiles + i)),
            ],
            out_specs=pl.BlockSpec((1, 8, 128), lambda o, i: (o, 0, 0)),
            scratch_shapes=[pltpu.SMEM((1,), jnp.float32)],
        ),
        compiler_params=pltpu.CompilerParams(
            dimension_semantics=("parallel", "arbitrary")),
    )(pred_slab, tgt_slab)
    return jnp.sum(partials[:, 0, 0])


# -----------------------------------------------------------------------------
# NumPy port of the full PyTorch forward (verification only, not the hot path)
# -----------------------------------------------------------------------------
def _reference_loss_np(outputs_nchw, targets):
    def sigmoid(x):
        return 1.0 / (1.0 + np.exp(-x))

    def iou_np(a, b):
        tl = np.maximum(a[:, None, :2] - a[:, None, 2:] / 2.0,
                        b[None, :, :2] - b[None, :, 2:] / 2.0)
        br = np.minimum(a[:, None, :2] + a[:, None, 2:] / 2.0,
                        b[None, :, :2] + b[None, :, 2:] / 2.0)
        area_a = np.prod(a[:, 2:], axis=1)
        area_b = np.prod(b[:, 2:], axis=1)
        en = np.prod((tl < br).astype(a.dtype), axis=2)
        area_i = np.prod(br - tl, axis=2) * en
        return area_i / (area_a[:, None] + area_b[None, :] - area_i)

    N, n_ch, H, W = outputs_nchw.shape
    out = np.transpose(outputs_nchw, (0, 2, 3, 1)).astype(np.float32)

    iou_target = np.zeros((N, H * W, B), np.float32)
    iou_mask = np.ones((N, H * W, B), np.float32)
    box_target = np.zeros((N, H * W, B, 4), np.float32)
    box_mask = np.zeros((N, H * W, B), np.float32)
    class_target = np.zeros((N, H * W), np.float32)
    class_mask = np.zeros((N, H * W), np.float32)

    x_shift = np.arange(W, dtype=np.float32).reshape(1, W, 1)
    y_shift = np.arange(H, dtype=np.float32).reshape(H, 1, 1)
    all_pred = sigmoid(out[..., :B * 4].reshape(N, H, W, B, 4))
    all_pred[..., 0] += x_shift
    all_pred[..., 1] += y_shift
    all_pred[..., 2] *= W
    all_pred[..., 3] *= H

    gt_num_objs = (targets.sum(axis=2) > 0).sum(axis=1)
    for ni in range(N):
        num_obj = int(gt_num_objs[ni])
        if num_obj == 0:
            iou_mask[ni, ...] = 0
            continue
        gt_cls = targets[ni, :num_obj, 0]
        gt_boxes = targets[ni, :num_obj, 1:].copy()
        gt_boxes[:, 0::2] *= W
        gt_boxes[:, 1::2] *= H
        pred_boxes = all_pred[ni].reshape(-1, 4)
        ious = iou_np(pred_boxes, gt_boxes).reshape(H * W, B, num_obj)
        max_iou = ious.max(axis=-1, keepdims=True)
        if (max_iou.reshape(-1) > IGNORE_THRESH).sum() > 0:
            iou_mask[ni][max_iou.squeeze(-1) >= IGNORE_THRESH] = 0
        for oi in range(num_obj):
            gt_box = gt_boxes[oi].copy()
            cell_x, cell_y = np.floor(gt_box[0]), np.floor(gt_box[1])
            cell_idx = int(cell_y * W + cell_x)
            class_target[ni, cell_idx] = float(int(gt_cls[oi]))
            class_mask[ni, cell_idx] = 1
            argmax_idx = int(np.argmax(ious[cell_idx, :, oi]))
            delta = gt_box.copy()
            delta[0] -= cell_x
            delta[1] -= cell_y
            delta[2] /= W
            delta[3] /= H
            box_target[ni, cell_idx, argmax_idx, :] = delta
            box_mask[ni, cell_idx, argmax_idx] = 1
            iou_target[ni, cell_idx, argmax_idx] = max_iou[cell_idx, argmax_idx, 0]
            iou_mask[ni, cell_idx, argmax_idx] = 2

    box_pred = sigmoid(out[..., :B * 4].reshape(-1, 4))
    conf_pred = sigmoid(out[..., B * 4:B * 5].reshape(-1))
    prob_logits = out[..., B * 5:].reshape(-1, C)
    iou_t, iou_m = iou_target.reshape(-1), iou_mask.reshape(-1)
    box_t, box_m = box_target.reshape(-1, 4), box_mask.reshape(-1)
    cls_t, cls_m = class_target.reshape(-1).astype(np.int64), class_mask.reshape(-1)

    loss_obj = np.sum((conf_pred[iou_m == 2] - iou_t[iou_m == 2]) ** 2)
    loss_noobj = np.sum((conf_pred[iou_m == 1] - iou_t[iou_m == 1]) ** 2)
    pb, bt = box_pred[box_m > 0], box_t[box_m > 0]
    loss_xy = np.sum((pb[:, :2] - bt[:, :2]) ** 2)
    loss_wh = np.sum((np.sqrt(pb[:, 2:4]) - np.sqrt(bt[:, 2:4])) ** 2)
    pp, ct = prob_logits[cls_m > 0], cls_t[cls_m > 0]
    rmax = pp.max(axis=1, keepdims=True)
    lse = np.log(np.sum(np.exp(pp - rmax), axis=1)) + rmax[:, 0]
    loss_class = np.sum(lse - pp[np.arange(len(ct)), ct])
    return float((loss_xy + loss_wh) * LAMBDA_COORD + loss_obj * LAMBDA_OBJ
                 + loss_noobj * LAMBDA_NOOBJ + loss_class * LAMBDA_CLASS)


if __name__ == "__main__":
    key = jax.random.PRNGKey(0)
    k1, k2, k3 = jax.random.split(key, 3)

    N, max_objs = 2, 3
    # model outputs (NCHW) like the YOLOv1 detection head
    outputs = jax.random.normal(k1, (N, N_CH, S, S), dtype=jnp.float32)
    # targets: (N, max_objs, 5) rows = [class_id, cx, cy, w, h] (normalized)
    cls_ids = jax.random.randint(k2, (N, max_objs, 1), 0, C).astype(jnp.float32)
    boxes = jax.random.uniform(k3, (N, max_objs, 4), minval=0.1, maxval=0.85,
                               dtype=jnp.float32)
    targets = jnp.concatenate([cls_ids, boxes], axis=-1)
    targets = targets.at[0, 2].set(0.0)  # image 0 has only 2 valid objects

    loss = yolov1_loss(outputs, targets)
    jax.block_until_ready(loss)

    # verify against a NumPy port of the full PyTorch reference
    ref = _reference_loss_np(np.asarray(outputs), np.asarray(targets, np.float32))
    assert np.allclose(np.asarray(loss), ref, rtol=1e-4, atol=1e-3), (float(loss), ref)

    print("KERNEL_OK")
</pallas_src>

<mosaic_0001>
module attributes {stable_mosaic.version = 11 : i64} {
  func.func @_yolo_loss_kernel(%arg0: i32, %arg1: i32, %arg2: memref<30x128xf32, #tpu.memory_space<vmem>>, %arg3: memref<16x128xf32, #tpu.memory_space<vmem>>, %arg4: memref<1x8x128xf32, #tpu.memory_space<vmem>>, %arg5: memref<1xf32, #tpu.memory_space<smem>>) attributes {dimension_semantics = [#tpu.dimension_semantics<parallel>, #tpu.dimension_semantics<arbitrary>], iteration_bounds = array<i64: 1, 1>, scalar_prefetch = 0 : i64, scratch_operands = 1 : i64, tpu.core_type = #tpu.core_type<tc>, window_params = [{transform_indices = @transform_0, window_bounds = array<i64: 30, 128>}, {transform_indices = @transform_1, window_bounds = array<i64: 16, 128>}, {transform_indices = @transform_2, window_bounds = array<i64: 1, 8, 128>}]} {
    %c0_i32 = arith.constant 0 : i32
    %0 = arith.cmpi eq, %arg1, %c0_i32 : i32
    %1 = arith.extui %0 : i1 to i32
    %c0_i32_0 = arith.constant 0 : i32
    %2 = arith.cmpi ne, %1, %c0_i32_0 : i32
    scf.if %2 {
      %cst_20 = arith.constant 0.000000e+00 : f32
      %c0_21 = arith.constant 0 : index
      %88 = memref.load %arg5[%c0_21] : memref<1xf32, #tpu.memory_space<smem>>
      memref.store %cst_20, %arg5[%c0_21] : memref<1xf32, #tpu.memory_space<smem>>
    } else {
    }
    %c0 = arith.constant 0 : index
    %c0_1 = arith.constant 0 : index
    %3 = vector.load %arg3[%c0, %c0_1] : memref<16x128xf32, #tpu.memory_space<vmem>>, vector<16x128xf32>
    %c0_2 = arith.constant 0 : index
    %c0_3 = arith.constant 0 : index
    %4 = vector.load %arg2[%c0_2, %c0_3] : memref<30x128xf32, #tpu.memory_space<vmem>>, vector<10x128xf32>
    %5 = arith.negf %4 : vector<10x128xf32>
    %6 = math.exp %5 : vector<10x128xf32>
    %cst = arith.constant 1.000000e+00 : f32
    %7 = vector.broadcast %cst : f32 to vector<10x128xf32>
    %8 = arith.addf %7, %6 : vector<10x128xf32>
    %9 = arith.divf %7, %8 : vector<10x128xf32>
    %10 = vector.extract_strided_slice %9 {offsets = [8, 0], sizes = [2, 128], strides = [1, 1]} : vector<10x128xf32> to vector<2x128xf32>
    %11 = vector.extract_strided_slice %3 {offsets = [0, 0], sizes = [2, 128], strides = [1, 1]} : vector<16x128xf32> to vector<2x128xf32>
    %12 = arith.subf %10, %11 : vector<2x128xf32>
    %13 = arith.mulf %12, %12 : vector<2x128xf32>
    %14 = vector.extract_strided_slice %3 {offsets = [2, 0], sizes = [2, 128], strides = [1, 1]} : vector<16x128xf32> to vector<2x128xf32>
    %15 = arith.mulf %13, %14 : vector<2x128xf32>
    %16 = vector.extract_strided_slice %9 {offsets = [0, 0], sizes = [8, 128], strides = [1, 1]} : vector<10x128xf32> to vector<8x128xf32>
    %17 = tpu.iota {dimensions = array<i32: 0>} : vector<8x128xi32>
    %c4_i32 = arith.constant 4 : i32
    %c0_i32_4 = arith.constant 0 : i32
    %18 = arith.cmpi eq, %c4_i32, %c0_i32_4 : i32
    %c1_i32 = arith.constant 1 : i32
    %19 = arith.select %18, %c1_i32, %c4_i32 : i32
    %20 = vector.broadcast %19 : i32 to vector<8x128xi32>
    %21 = arith.remsi %17, %20 : vector<8x128xi32>
    %c0_i32_5 = arith.constant 0 : i32
    %22 = vector.broadcast %c0_i32_5 : i32 to vector<8x128xi32>
    %23 = arith.cmpi ne, %21, %22 : vector<8x128xi32>
    %c0_i32_6 = arith.constant 0 : i32
    %24 = vector.broadcast %c0_i32_6 : i32 to vector<8x128xi32>
    %25 = arith.cmpi slt, %21, %24 : vector<8x128xi32>
    %c0_i32_7 = arith.constant 0 : i32
    %26 = arith.cmpi slt, %19, %c0_i32_7 : i32
    %27 = vector.broadcast %26 : i1 to vector<8x128xi1>
    %28 = vector.broadcast %27 : vector<8x128xi1> to vector<8x128xi1>
    %29 = arith.xori %25, %28 : vector<8x128xi1>
    %30 = arith.andi %29, %23 : vector<8x128xi1>
    %31 = vector.broadcast %19 : i32 to vector<8x128xi32>
    %32 = arith.addi %21, %31 : vector<8x128xi32>
    %33 = arith.select %30, %32, %21 : vector<8x128xi1>, vector<8x128xi32>
    %c2_i32 = arith.constant 2 : i32
    %34 = vector.broadcast %c2_i32 : i32 to vector<8x128xi32>
    %35 = arith.cmpi sge, %33, %34 : vector<8x128xi32>
    %36 = math.sqrt %16 : vector<8x128xf32>
    %37 = arith.select %35, %36, %16 : vector<8x128xi1>, vector<8x128xf32>
    %38 = vector.extract_strided_slice %3 {offsets = [4, 0], sizes = [8, 128], strides = [1, 1]} : vector<16x128xf32> to vector<8x128xf32>
    %39 = arith.subf %37, %38 : vector<8x128xf32>
    %40 = arith.mulf %39, %39 : vector<8x128xf32>
    %41 = vector.extract_strided_slice %40 {offsets = [0, 0], sizes = [4, 128], strides = [1, 1]} : vector<8x128xf32> to vector<4x128xf32>
    %42 = vector.extract_strided_slice %3 {offsets = [12, 0], sizes = [1, 128], strides = [1, 1]} : vector<16x128xf32> to vector<1x128xf32>
    %43 = vector.broadcast %42 : vector<1x128xf32> to vector<4x128xf32>
    %44 = arith.mulf %41, %43 : vector<4x128xf32>
    %45 = vector.extract_strided_slice %40 {offsets = [4, 0], sizes = [4, 128], strides = [1, 1]} : vector<8x128xf32> to vector<4x128xf32>
    %46 = vector.extract_strided_slice %3 {offsets = [13, 0], sizes = [1, 128], strides = [1, 1]} : vector<16x128xf32> to vector<1x128xf32>
    %47 = vector.broadcast %46 : vector<1x128xf32> to vector<4x128xf32>
    %48 = arith.mulf %45, %47 : vector<4x128xf32>
    %49 = arith.addf %44, %48 : vector<4x128xf32>
    %c10 = arith.constant 10 : index
    %c0_8 = arith.constant 0 : index
    %50 = vector.load %arg2[%c10, %c0_8] : memref<30x128xf32, #tpu.memory_space<vmem>>, vector<20x128xf32>
    %51 = vector.extract_strided_slice %3 {offsets = [14, 0], sizes = [1, 128], strides = [1, 1]} : vector<16x128xf32> to vector<1x128xf32>
    %52 = arith.fptosi %51 : vector<1x128xf32> to vector<1x128xi32>
    %53 = vector.extract_strided_slice %3 {offsets = [15, 0], sizes = [1, 128], strides = [1, 1]} : vector<16x128xf32> to vector<1x128xf32>
    %cst_9 = arith.constant dense<0xFF800000> : vector<128xf32>
    %54 = vector.multi_reduction <maximumf>, %50, %cst_9 [0] : vector<20x128xf32> to vector<128xf32>
    %55 = vector.shape_cast %54 : vector<128xf32> to vector<1x128xf32>
    %56 = vector.broadcast %55 : vector<1x128xf32> to vector<20x128xf32>
    %57 = arith.subf %50, %56 : vector<20x128xf32>
    %58 = math.exp %57 : vector<20x128xf32>
    %cst_10 = arith.constant dense<0.000000e+00> : vector<128xf32>
    %59 = vector.multi_reduction <add>, %58, %cst_10 [0] : vector<20x128xf32> to vector<128xf32>
    %60 = vector.shape_cast %59 : vector<128xf32> to vector<1x128xf32>
    %61 = math.log %60 : vector<1x128xf32>
    %62 = arith.addf %61, %55 : vector<1x128xf32>
    %63 = tpu.iota {dimensions = array<i32: 0>} : vector<20x128xi32>
    %64 = vector.broadcast %52 : vector<1x128xi32> to vector<20x128xi32>
    %65 = arith.cmpi eq, %63, %64 : vector<20x128xi32>
    %cst_11 = arith.constant 0.000000e+00 : f32
    %66 = vector.broadcast %cst_11 : f32 to vector<20x128xf32>
    %67 = arith.select %65, %50, %66 : vector<20x128xi1>, vector<20x128xf32>
    %cst_12 = arith.constant dense<0.000000e+00> : vector<128xf32>
    %68 = vector.multi_reduction <add>, %67, %cst_12 [0] : vector<20x128xf32> to vector<128xf32>
    %69 = vector.shape_cast %68 : vector<128xf32> to vector<1x128xf32>
    %70 = arith.subf %62, %69 : vector<1x128xf32>
    %71 = arith.mulf %70, %53 : vector<1x128xf32>
    %cst_13 = arith.constant dense<0.000000e+00> : vector<128xf32>
    %72 = vector.multi_reduction <add>, %15, %cst_13 [0] : vector<2x128xf32> to vector<128xf32>
    %73 = vector.shape_cast %72 : vector<128xf32> to vector<1x128xf32>
    %cst_14 = arith.constant dense<0.000000e+00> : vector<128xf32>
    %74 = vector.multi_reduction <add>, %49, %cst_14 [0] : vector<4x128xf32> to vector<128xf32>
    %75 = vector.shape_cast %74 : vector<128xf32> to vector<1x128xf32>
    %76 = arith.addf %73, %75 : vector<1x128xf32>
    %77 = arith.addf %76, %71 : vector<1x128xf32>
    %c0_15 = arith.constant 0 : index
    %78 = memref.load %arg5[%c0_15] : memref<1xf32, #tpu.memory_space<smem>>
    %79 = vector.shape_cast %77 : vector<1x128xf32> to vector<1x1x128xf32>
    %cst_16 = arith.constant dense<0.000000e+00> : vector<1xf32>
    %80 = vector.multi_reduction <add>, %79, %cst_16 [1, 2] : vector<1x1x128xf32> to vector<1xf32>
    %81 = vector.shape_cast %80 : vector<1xf32> to vector<1x1x1xf32>
    %82 = vector.extract %81[0, 0, 0] : f32 from vector<1x1x1xf32>
    %83 = arith.addf %78, %82 : f32
    %c0_17 = arith.constant 0 : index
    %84 = memref.load %arg5[%c0_17] : memref<1xf32, #tpu.memory_space<smem>>
    memref.store %83, %arg5[%c0_17] : memref<1xf32, #tpu.memory_space<smem>>
    %c0_i32_18 = arith.constant 0 : i32
    %85 = arith.cmpi eq, %arg1, %c0_i32_18 : i32
    %86 = arith.extui %85 : i1 to i32
    %c0_i32_19 = arith.constant 0 : i32
    %87 = arith.cmpi ne, %86, %c0_i32_19 : i32
    scf.if %87 {
      %cst_20 = arith.constant 0.000000e+00 : f32
      %88 = vector.broadcast %cst_20 : f32 to vector<1x8x128xf32>
      %c0_21 = arith.constant 0 : index
      %89 = memref.load %arg5[%c0_21] : memref<1xf32, #tpu.memory_space<smem>>
      %90 = vector.broadcast %89 : f32 to vector<1x8x128xf32>
      %91 = arith.addf %88, %90 : vector<1x8x128xf32>
      %c0_22 = arith.constant 0 : index
      %c0_23 = arith.constant 0 : index
      %c0_24 = arith.constant 0 : index
      %92 = vector.load %arg4[%c0_22, %c0_23, %c0_24] : memref<1x8x128xf32, #tpu.memory_space<vmem>>, vector<1x8x128xf32>
      tpu.vector_store %arg4[%c0_22, %c0_23, %c0_24], %91 {strides = array<i32>} : memref<1x8x128xf32, #tpu.memory_space<vmem>>, vector<1x8x128xf32>,
    } else {
    }
    return
  }
  func.func @transform_0(%arg0: i32, %arg1: i32) -> (i32, i32) {
    %c1_i32 = arith.constant 1 : i32
    %0 = arith.muli %arg0, %c1_i32 : i32
    %1 = arith.addi %0, %arg1 : i32
    %c0_i32 = arith.constant 0 : i32
    %c0_i32_0 = arith.constant 0 : i32
    return %c0_i32, %1 : i32, i32
  }
  func.func @transform_1(%arg0: i32, %arg1: i32) -> (i32, i32) {
    %c1_i32 = arith.constant 1 : i32
    %0 = arith.muli %arg0, %c1_i32 : i32
    %1 = arith.addi %0, %arg1 : i32
    %c0_i32 = arith.constant 0 : i32
    %c0_i32_0 = arith.constant 0 : i32
    return %c0_i32, %1 : i32, i32
  }
  func.func @transform_2(%arg0: i32, %arg1: i32) -> (i32, i32, i32) {
    %c0_i32 = arith.constant 0 : i32
    %c0_i32_0 = arith.constant 0 : i32
    %c0_i32_1 = arith.constant 0 : i32
    return %arg0, %c0_i32, %c0_i32_0 : i32, i32, i32
  }
}

</mosaic_0001>

<llo_original>
// kernel: yolov1_loss.1
$region0: #{yolov1_loss.1}
  #allocation0 [shape = 'u32[]', space=smem, size = 0x4, offset = 0x4, fixed_abs, tag = 'smem constant byte address 0x4 - core index']
  #allocation1 [shape = 'u32[144,128]{1,0:T(1,128)}', space=vmem, size = 0x12000, scoped, tag = 'internal scratch']
  #allocation2 [shape = 'f32[1]{0:T(128)}', space=smem, size = 0x200, scoped, tag = 'scratch operand']
  %s0 = inlined_call_operand.vmem [shape: f32[30,128], index: 0, kind: input, shape index: {}]
  %s1 = inlined_call_operand.vmem [shape: f32[16,128], index: 1, kind: input, shape index: {}]
  %s2 = inlined_call_operand.vmem [shape: f32[1,8,128], index: 2, kind: output, shape index: {}]
  %s3 = sld [smem:[#allocation0]]
  $region26: #{yolov1_loss.1} parent=0
    _
  %s5 = ssub.s32 1, %s3
  %s6 = scalar_select 0, %s5, %s3
  // Predicated region
  $region2: #{yolov1_loss.1} parent=0 // pred_check
    _
  $region3: #{yolov1_loss.1} parent=0 // pred_check_branch
    %8 = sbr.rel (0) target = $region5
  $region4: #{yolov1_loss.1} parent=0 // pred_region
    %s9 = sadd.s32 0, 0
    %p10 = scmp.lt.s32.totalorder %s9, 0
    %s11 = scalar_select %p10, %s9, 0
    %s12 = smul.addr %s11, 8
    %s13 = scalar_lea.vmem %s0, %s12
    %s14 = sadd.s32 0, 0
  $region5: #{yolov1_loss.1} parent=0 // pred_fallthru
    _
  // Predicated region
  $region6: #{yolov1_loss.1} parent=0 // pred_check
    _
  $region7: #{yolov1_loss.1} parent=0 // pred_check_branch
    %16 = sbr.rel (0) target = $region9
  $region8: #{yolov1_loss.1} parent=0 // pred_region
    %s17 = sadd.s32 0, 0
    %p18 = scmp.lt.s32.totalorder %s17, 0
    %s19 = scalar_select %p18, %s17, 0
    %s20 = smul.addr %s19, 8
    %s21 = scalar_lea.vmem %s1, %s20
    %s22 = sadd.s32 0, 0
  $region9: #{yolov1_loss.1} parent=0 // pred_fallthru
    _
  %s23 = sadd.s32 0, 0
  %p24 = scmp.lt.s32.totalorder %s23, 0
  %s25 = scalar_select %p24, %s23, 0
  %s26 = smul.addr %s25, 8
  %s27 = scalar_lea.vmem %s0, %s26
  %s28 = sadd.s32 0, 0
  %p29 = scmp.lt.s32.totalorder %s28, 0
  %s30 = scalar_select %p29, %s28, 0
  %s31 = smul.addr %s30, 8
  %s32 = scalar_lea.vmem %s1, %s31
  %s33 = sadd.s32 0, 0
  %p34 = scmp.lt.s32.totalorder %s33, 0
  %s35 = scalar_select %p34, %s33, 0
  %s36 = smul.addr %s35, 8
  %s37 = scalar_lea.vmem %s0, %s36
  %s38 = sadd.s32 0, 0
  %s39 = sadd.s32 0, 0
  %p40 = scmp.lt.s32.totalorder %s39, 0
  %s41 = scalar_select %p40, %s39, 0
  %s42 = smul.addr %s41, 8
  %s43 = scalar_lea.vmem %s1, %s42
  %s44 = sadd.s32 0, 0
  %p45 = scmp.eq.s32.totalorder 0, 0
  // Predicated region
  $region10: #{yolov1_loss.1} parent=0 // pred_check
    %p46 = pneg %p45
  $region11: #{yolov1_loss.1} parent=0 // pred_check_branch
    %48 = sbr.rel (%p46) target = $region13
  $region12: #{yolov1_loss.1} parent=0 // pred_region
    %s49 = scalar_lea.smem [#allocation2], 0
    %50 = sst [smem:[%s49]] 0.0
  $region13: #{yolov1_loss.1} parent=0 // pred_fallthru
    _
  %v51 = vld [vmem:[%s43] sm:$0xff]
  %v52 = vld [vmem:[%s43 + $0x8] sm:$0xff]
  %v53 = vld [vmem:[%s37] sm:$0xff]
  %v54 = vld [vmem:[%s37 + $0x8] sm:$0x3]
  %v55 = vxor.u32 %v53, 2147483648
  %v56 = vxor.u32 %v54, 2147483648
  %v57 = vmul.f32 %v55, 1.442695
  %v58 = vpow.pop %v57
  %v59 = vmul.f32 %v56, 1.442695
  %v60 = vpow.pop %v59
  %v61 = vadd.f32 %v58, 1.0
  %v62 = vadd.f32 %v60, 1.0
  %v63 = vrcp.pop %v61
  %v64 = vmul.f32 1.0, %v63
  %v65 = vrcp.pop %v62
  %v66 = vmul.f32 1.0, %v65
  %v67 = vsub.f32 %v66, %v51
  %v68 = vmul.f32 %v67, %v67
  %v70 = vrot.slane %v51, 2
  %v72 = vmul.f32 %v68, %v70
  %v73 = vlaneseq
  %v74 = vshrl.u32 %v73, 7
  %vm75 = vcmp.lt.s32.totalorder %v74, 0
  %v76 = vsub.s32 0, %v74
  %v77 = vsel %vm75, %v76, %v74
  %v78 = vshrl.u32 %v77, 2
  %v79 = vand.u32 %v77, 3
  %v80 = vsub.s32 0, %v79
  %v81 = vsel %vm75, %v80, %v79
  %vm82 = vcmp.ne.s32.totalorder %v81, 0
  %vm83 = vcmp.lt.s32.totalorder %v81, 0
  %vm84 = vmand %vm83, %vm82
  %v85 = vadd.s32 %v81, 4
  %v86 = vsel %vm84, %v85, %v81
  %vm87 = vcmp.ge.s32.totalorder %v86, 2
  %v88 = vrsqrt.pop %v64
  %v89 = vmul.f32 %v64, %v88
  %vm90 = vcmp.eq.f32.partialorder %v64, inf
  %v91 = vsel %vm90, %v64, %v89
  %vm92 = vcmp.eq.f32.partialorder %v64, 0.0
  %v93 = vand.u32 %v64, 2147483648
  %v94 = vsel %vm92, %v93, %v91
  %v95 = vsel %vm87, %v94, %v64
  %vm97 = vcmask 1043456
  %v98 = vrot.slane %v51, 4
  %v99 = vrot.slane %v52, 4
  %v100 = vsel %vm97, %v98, %v99
  %v102 = vsub.f32 %v95, %v100
  %v103 = vmul.f32 %v102, %v102
  %v104 = vlaneseq
  %v105 = vshrl.u32 %v104, 7
  %v106 = vsub.s32 4, %v105
  %v107 = vrot.slane %v52, %v106
  %v108 = vmul.f32 %v103, %v107
  %v109 = vlaneseq
  %v110 = vshrl.u32 %v109, 7
  %v111 = vsub.s32 5, %v110
  %v112 = vrot.slane %v52, %v111
  %v113 = vmul.f32 %v103, %v112
  %v115 = vrot.slane %v113, 4
  %v117 = vadd.f32 %v108, %v115
  %v118 = vld [vmem:[%s37 + $0xa] sm:$0xff]
  %v119 = vld [vmem:[%s37 + $0x12] sm:$0xff]
  %v120 = vld [vmem:[%s37 + $0x1a] sm:$0xf]
  %v121 = vcvt.f32.s32.to.zero.pseudo %v52
  %v122 = vsel %vm97, %v120, -inf
  %v123 = vmax.f32 %v118, %v119
  %v124 = vmax.f32 %v123, %v122
  %v125 = vrot.slane %v124, 4
  %v126 = vmax.f32 %v124, %v125
  %v127 = vrot.slane %v126, 2
  %v128 = vmax.f32 %v126, %v127
  %v129 = vrot.slane %v128, 1
  %v130 = vmax.f32 %v128, %v129
  %v131 = vsub.f32 %v118, %v130
  %v132 = vsub.f32 %v119, %v130
  %v133 = vsub.f32 %v120, %v130
  %v134 = vmul.f32 %v131, 1.442695
  %v135 = vpow.pop %v134
  %v136 = vmul.f32 %v132, 1.442695
  %v137 = vpow.pop %v136
  %v138 = vmul.f32 %v133, 1.442695
  %v139 = vpow.pop %v138
  %v140 = vadd.f32 %v135, %v137
  %v141 = vsel %vm97, %v139, 0.0
  %v142 = vadd.f32 %v140, %v141
  %v143 = vrot.slane %v142, 4
  %v144 = vadd.f32 %v142, %v143
  %v145 = vrot.slane %v144, 2
  %v146 = vadd.f32 %v144, %v145
  %v147 = vrot.slane %v146, 1
  %v148 = vadd.f32 %v146, %v147
  %v149 = vlog2.pop %v148
  %v150 = vmul.f32 %v149, 0.6931472
  %v151 = vadd.f32 %v150, %v130
  %v152 = vadd.s32 %v74, 8
  %v153 = vadd.s32 %v74, 16
  %v154 = vlaneseq
  %v155 = vshrl.u32 %v154, 7
  %v156 = vsub.s32 6, %v155
  %v157 = vrot.slane %v121, %v156
  %vm158 = vcmp.eq.s32.totalorder %v74, %v157
  %vm159 = vcmp.eq.s32.totalorder %v152, %v157
  %vm160 = vcmp.eq.s32.totalorder %v153, %v157
  %v161 = vsel %vm158, %v118, 0.0
  %v162 = vsel %vm159, %v119, 0.0
  %v163 = vsel %vm160, %v120, 0.0
  %v164 = vadd.f32 %v161, %v162
  %v165 = vsel %vm97, %v163, 0.0
  %v166 = vadd.f32 %v164, %v165
  %v167 = vrot.slane %v166, 4
  %v168 = vadd.f32 %v166, %v167
  %v169 = vrot.slane %v168, 2
  %v170 = vadd.f32 %v168, %v169
  %v171 = vrot.slane %v170, 1
  %v172 = vadd.f32 %v170, %v171
  %v173 = vsub.f32 %v151, %v172
  %v174 = vmul.f32 %v173, %v52
  %vm175 = vcmask 1041408
  %v176 = vsel %vm175, %v72, 0.0
  %v177 = vrot.slane %v176, 4
  %v178 = vadd.f32 %v176, %v177
  %v179 = vrot.slane %v178, 2
  %v180 = vadd.f32 %v178, %v179
  %v181 = vrot.slane %v180, 1
  %v182 = vadd.f32 %v180, %v181
  %v183 = vsel %vm97, %v117, 0.0
  %v184 = vrot.slane %v183, 4
  %v185 = vadd.f32 %v183, %v184
  %v186 = vrot.slane %v185, 2
  %v187 = vadd.f32 %v185, %v186
  %v188 = vrot.slane %v187, 1
  %v189 = vadd.f32 %v187, %v188
  %v190 = vadd.f32 %v182, %v189
  %v191 = vadd.f32 %v190, %v174
  %s192 = sld [smem:[#allocation2]]
  %v194 = vrot.slane %v191, 7
  %vm196 = vcmask 1040384
  %v197 = vsel %vm196, %v194, 0.0
  %198 = vadd.xlane.f32.xlu0 %v197
  %v199 = vpop.xlane.xlu0 %198
  %v200 = vrot.slane %v199, 4
  %v201 = vadd.f32 %v199, %v200
  %v202 = vrot.slane %v201, 2
  %v203 = vadd.f32 %v201, %v202
  %v204 = vrot.slane %v203, 1
  %v205 = vadd.f32 %v203, %v204
  %s206 = vtos %v205
  %s207 = sadd.f32 %s192, %s206
  %s208 = scalar_lea.smem [#allocation2], 0
  %209 = sst [smem:[%s208]] %s207
  // Predicated region
  $region14: #{yolov1_loss.1} parent=0 // pred_check
    %p210 = pneg %p45
  $region15: #{yolov1_loss.1} parent=0 // pred_check_branch
    %212 = sbr.rel (%p210) target = $region17
  $region16: #{yolov1_loss.1} parent=0 // pred_region
    %s213 = sld [smem:[#allocation2]]
    %v214 = vstv %s213
    %v215 = vadd.f32 %v214, 0.0
    %216 = vst [vmem:[%s2] sm:$0xff] %v215
  $region17: #{yolov1_loss.1} parent=0 // pred_fallthru
    _
  // Predicated region
  $region18: #{yolov1_loss.1} parent=0 // pred_check
    _
  $region19: #{yolov1_loss.1} parent=0 // pred_check_branch
    %218 = sbr.rel (0) target = $region21
  $region20: #{yolov1_loss.1} parent=0 // pred_region
    _
  $region21: #{yolov1_loss.1} parent=0 // pred_fallthru
    _
  // Predicated region
  $region22: #{yolov1_loss.1} parent=0 // pred_check
    _
  $region23: #{yolov1_loss.1} parent=0 // pred_check_branch
    %220 = sbr.rel (0) target = $region25
  $region24: #{yolov1_loss.1} parent=0 // pred_region
    _
  $region25: #{yolov1_loss.1} parent=0 // pred_fallthru
    _

</llo_original>
